<compile_context>
chip_gen: v7x
topology: tpu7x:2x2x1
jax: 0.10.0
libtpu: 0.0.40
codegen_flags: <defaults>
</compile_context>

<pallas_src>
import math

import jax
import jax.numpy as jnp
from jax.experimental import pallas as pl
from jax.experimental.pallas import tpu as pltpu


def make_positional_encoding(max_len: int, d_model: int, dtype=jnp.float32):
    """Deterministic pe buffer, identical math to the PyTorch __init__."""
    position = jnp.arange(max_len, dtype=jnp.float32)[:, None]              # (L, 1)
    div_term = jnp.exp(
        jnp.arange(0, d_model, 2, dtype=jnp.float32) * (-math.log(10000.0) / d_model)
    )                                                                        # (D/2,)
    pe = jnp.zeros((max_len, d_model), dtype=jnp.float32)
    pe = pe.at[:, 0::2].set(jnp.sin(position * div_term))
    pe = pe.at[:, 1::2].set(jnp.cos(position * div_term))
    return pe[None].astype(dtype)                                            # (1, L, D)


# ---------------------------------------------------------------------------
# Kernels (pure elementwise; compute in the operand dtype).
# ---------------------------------------------------------------------------
def _pe_add_kernel(x_ref, pe_ref, o_ref):
    # x_ref: (tB, tN), pe_ref: (1, tN) broadcast over the batch rows.
    o_ref[...] = x_ref[...] + pe_ref[...]


def _pe_add_dropout_kernel(x_ref, pe_ref, mult_ref, o_ref):
    # mult_ref already holds keep/(1-p): 0 for dropped elems, 1/(1-p) for kept.
    o_ref[...] = (x_ref[...] + pe_ref[...]) * mult_ref[...]


# ---------------------------------------------------------------------------
# Tiling: biggest lane-dense block under a ~2 MiB budget, respecting the
# (8, 128) block-shape constraint (dims must be multiples of (8, 128) or full).
# ---------------------------------------------------------------------------
def _choose_tiles(B: int, N: int, itemsize: int, budget_bytes: int = 2 * 1024 * 1024):
    full_row = N * itemsize
    if B * full_row <= budget_bytes:
        return B, N                                   # whole array in one block
    tB = max(1, budget_bytes // full_row)
    if tB >= B:
        return B, N
    if tB >= 8:
        return (tB // 8) * 8, N                       # multiple of 8 batch rows
    # Rows are huge: take (up to) 8 rows and tile the lane dimension instead.
    tB = min(B, 8)
    tN = max(128, (budget_bytes // (tB * itemsize)) // 128 * 128)
    return tB, min(tN, N)


def positional_encoding_forward(x, pe, *, dropout_p=0.1, is_training=False, rng_key=None):
    """x: (B, L, D), pe: (1, max_len>=L, D) -> (B, L, D).  Eval mode == x + pe."""
    B, L, D = x.shape
    pe = jnp.asarray(pe)
    if pe.ndim == 3:
        pe = pe[0]
    assert pe.shape[0] >= L and pe.shape[1] == D, (pe.shape, x.shape)

    N = L * D
    x2 = x.reshape(B, N)                               # lane-dense view
    pe2 = pe[:L].reshape(1, N).astype(x.dtype)

    tB, tN = _choose_tiles(B, N, jnp.dtype(x.dtype).itemsize)
    # N-tiles on the OUTER axis so the pe block index is constant across the
    # inner (batch) axis -> pe stays resident in VMEM instead of re-fetching.
    grid = (pl.cdiv(N, tN), pl.cdiv(B, tB))

    x_spec = pl.BlockSpec((tB, tN), lambda j, i: (i, j))
    pe_spec = pl.BlockSpec((1, tN), lambda j, i: (0, j))
    out_spec = pl.BlockSpec((tB, tN), lambda j, i: (i, j))

    apply_dropout = bool(is_training) and float(dropout_p) > 0.0
    if apply_dropout:
        if rng_key is None:
            rng_key = jax.random.PRNGKey(0)
        keep = jax.random.bernoulli(rng_key, 1.0 - float(dropout_p), (B, N))
        scale = jnp.asarray(1.0 / (1.0 - float(dropout_p)), dtype=x.dtype)
        mult = keep.astype(x.dtype) * scale            # inverted-dropout multiplier
        operands = (x2, pe2, mult)
        in_specs = [x_spec, pe_spec, x_spec]
        kernel = _pe_add_dropout_kernel
    else:
        operands = (x2, pe2)
        in_specs = [x_spec, pe_spec]
        kernel = _pe_add_kernel

    out = pl.pallas_call(
        kernel,
        out_shape=jax.ShapeDtypeStruct((B, N), x.dtype),
        grid_spec=pltpu.PrefetchScalarGridSpec(
            num_scalar_prefetch=0,
            grid=grid,
            in_specs=in_specs,
            out_specs=out_spec,
        ),
        compiler_params=pltpu.CompilerParams(
            dimension_semantics=("parallel", "parallel")
        ),
    )(*operands)
    return out.reshape(B, L, D)


if __name__ == "__main__":
    # Small shapes consistent with the module: d_model=32, seq_len=8, batch=2.
    B, L, D = 2, 8, 32
    key = jax.random.PRNGKey(0)
    kx, kd = jax.random.split(key)
    x = jax.random.normal(kx, (B, L, D), dtype=jnp.float32)
    pe = make_positional_encoding(max_len=L, d_model=D, dtype=jnp.float32)

    # Eval mode (dropout = identity): must match x + pe exactly.
    y_eval = jax.block_until_ready(
        positional_encoding_forward(x, pe, dropout_p=0.1, is_training=False)
    )
    ref_eval = x + pe
    assert jnp.allclose(y_eval, ref_eval, atol=1e-6, rtol=1e-6), "eval-mode mismatch"

    # Training mode: inverted dropout with a deterministic host-generated mask.
    p = 0.1
    y_train = jax.block_until_ready(
        positional_encoding_forward(x, pe, dropout_p=p, is_training=True, rng_key=kd)
    )
    keep = jax.random.bernoulli(kd, 1.0 - p, (B, L * D)).reshape(B, L, D)
    ref_train = (x + pe) * keep.astype(x.dtype) / (1.0 - p)
    assert y_train.shape == (B, L, D)
    assert jnp.allclose(y_train, ref_train, atol=1e-5, rtol=1e-5), "train-mode mismatch"

    print("KERNEL_OK")
</pallas_src>

<mosaic_0001>
module attributes {stable_mosaic.version = 11 : i64} {
  func.func @_pe_add_kernel(%arg0: i32, %arg1: i32, %arg2: memref<2x256xf32, #tpu.memory_space<vmem>>, %arg3: memref<1x256xf32, #tpu.memory_space<vmem>>, %arg4: memref<2x256xf32, #tpu.memory_space<vmem>>) attributes {dimension_semantics = [#tpu.dimension_semantics<parallel>, #tpu.dimension_semantics<parallel>], iteration_bounds = array<i64: 1, 1>, scalar_prefetch = 0 : i64, scratch_operands = 0 : i64, tpu.core_type = #tpu.core_type<tc>, window_params = [{transform_indices = @transform_0, window_bounds = array<i64: 2, 256>}, {transform_indices = @transform_1, window_bounds = array<i64: 1, 256>}, {transform_indices = @transform_2, window_bounds = array<i64: 2, 256>}]} {
    %c0 = arith.constant 0 : index
    %c0_0 = arith.constant 0 : index
    %0 = vector.load %arg2[%c0, %c0_0] : memref<2x256xf32, #tpu.memory_space<vmem>>, vector<2x256xf32>
    %c0_1 = arith.constant 0 : index
    %c0_2 = arith.constant 0 : index
    %1 = vector.load %arg3[%c0_1, %c0_2] : memref<1x256xf32, #tpu.memory_space<vmem>>, vector<1x256xf32>
    %2 = vector.broadcast %1 : vector<1x256xf32> to vector<2x256xf32>
    %3 = arith.addf %0, %2 : vector<2x256xf32>
    %c0_3 = arith.constant 0 : index
    %c0_4 = arith.constant 0 : index
    %4 = vector.load %arg4[%c0_3, %c0_4] : memref<2x256xf32, #tpu.memory_space<vmem>>, vector<2x256xf32>
    tpu.vector_store %arg4[%c0_3, %c0_4], %3 {strides = array<i32>} : memref<2x256xf32, #tpu.memory_space<vmem>>, vector<2x256xf32>,
    return
  }
  func.func @transform_0(%arg0: i32, %arg1: i32) -> (i32, i32) {
    %c0_i32 = arith.constant 0 : i32
    return %arg1, %arg0 : i32, i32
  }
  func.func @transform_1(%arg0: i32, %arg1: i32) -> (i32, i32) {
    %c0_i32 = arith.constant 0 : i32
    %c0_i32_0 = arith.constant 0 : i32
    return %c0_i32, %arg0 : i32, i32
  }
  func.func @transform_2(%arg0: i32, %arg1: i32) -> (i32, i32) {
    %c0_i32 = arith.constant 0 : i32
    return %arg1, %arg0 : i32, i32
  }
}

</mosaic_0001>

<llo_original>
// kernel: tpu_custom_call.1
$region0: #{tpu_custom_call.1}
  #allocation0 [shape = 'u32[]', space=smem, size = 0x4, offset = 0x4, fixed_abs, tag = 'smem constant byte address 0x4 - core index']
  #allocation1 [shape = 'u32[144,128]{1,0:T(1,128)}', space=vmem, size = 0x12000, scoped, tag = 'internal scratch']
  %s0 = inlined_call_operand.hbm [shape: f32[2,256], index: 0, kind: input, shape index: {}]
  %s1 = inlined_call_operand.vmem [shape: f32[1,256], index: 1, kind: input, shape index: {}]
  %s2 = inlined_call_operand.hbm [shape: f32[2,256], index: 2, kind: output, shape index: {}]
  %s3 = sld [smem:[#allocation0]]
  $region22: #{tpu_custom_call.1} parent=0
    _
  %s5 = ssub.s32 1, %s3
  %s6 = scalar_select 0, %s5, %s3
  $region1: #{tpu_custom_call.1} parent=0
    #allocation2 [shape = 'u8[2048]{0}', space=vmem, size = 0x800, scoped, tag = 'input window, operand 0, single buffered']
    #allocation3 [shape = 's32[1]{0}', space=sflag, size = 0x4, scoped, tag = 'scoped memory for tpu_custom_call.1']
    #allocation4 [shape = 's32[1]{0}', space=sflag, size = 0x4, scoped, tag = 'scoped memory for tpu_custom_call.1']
    #allocation5 [shape = 'u8[2048]{0}', space=vmem, size = 0x800, scoped, tag = 'output window, operand 0, single buffered']
    %7 = vsyncpa [#allocation3], 0
    %8 = vsyncpa [#allocation4], 0
    // Predicated region
    $region2: #{tpu_custom_call.1} parent=1 // pred_check
      _
    $region3: #{tpu_custom_call.1} parent=1 // pred_check_branch
      %10 = sbr.rel (0) target = $region5
    $region4: #{tpu_custom_call.1} parent=1 // pred_region
      %s12 = ssub.s32 64, 64
      %13 = vsyncadd [#allocation3], %s12
      %s15 = sshll.u32 [#allocation2], 4
      %s16 = int_to_ptr.vmem [resolvable:$true] %s15
      %18 = dma.hbm_to_vmem [thread:$0]  %s0, 64, %s16, [#allocation3]
    $region5: #{tpu_custom_call.1} parent=1 // pred_fallthru
      _
    // Predicated region
    $region6: #{tpu_custom_call.1} parent=1 // pred_check
      _
    $region7: #{tpu_custom_call.1} parent=1 // pred_check_branch
      %20 = sbr.rel (0) target = $region9
    $region8: #{tpu_custom_call.1} parent=1 // pred_region
      _
    $region9: #{tpu_custom_call.1} parent=1 // pred_fallthru
      _
    // Predicated region
    $region10: #{tpu_custom_call.1} parent=1 // pred_check
      _
    $region11: #{tpu_custom_call.1} parent=1 // pred_check_branch
      %22 = sbr.rel (0) target = $region13
    $region12: #{tpu_custom_call.1} parent=1 // pred_region
      %23 = dma.done [#allocation3], 64
    $region13: #{tpu_custom_call.1} parent=1 // pred_fallthru
      _
    %v24 = vld [vmem:[#allocation2] sm:$0xf]
    %v25 = vld [vmem:[%s1] sm:$0x3]
    %v27 = vlaneseq
    %v28 = vshrl.u32 %v27, 7
    %v29 = vsub.s32 0, %v28
    %v30 = vrot.slane %v25, %v29
    %v31 = vlaneseq
    %v32 = vshrl.u32 %v31, 7
    %v33 = vsub.s32 1, %v32
    %v34 = vrot.slane %v25, %v33
    %v35 = vcombine.low %v30, %v34
    %v37 = vunpack.c.l.s4 1983009808
    %v38 = vunpack.c.0.s8 %v37
    %v39 = vlaneseq
    %v40 = vshrl.u32 %v39, 7
    %v41 = vsub.s32 %v38, %v40
    %v42 = vrot.slane %v35, %v41
    %v44 = vadd.f32 %v24, %v42
    %45 = vst [vmem:[#allocation5] sm:$0xf] %v44
    // Predicated region
    $region14: #{tpu_custom_call.1} parent=1 // pred_check
      _
    $region15: #{tpu_custom_call.1} parent=1 // pred_check_branch
      %47 = sbr.rel (0) target = $region17
    $region16: #{tpu_custom_call.1} parent=1 // pred_region
      %s49 = ssub.s32 64, 64
      %50 = vsyncadd [#allocation4], %s49
      %s52 = sshll.u32 [#allocation5], 4
      %s53 = int_to_ptr.vmem [resolvable:$true] %s52
      %55 = dma.vmem_to_hbm [thread:$0]  %s53, 64, %s2, [#allocation4]
    $region17: #{tpu_custom_call.1} parent=1 // pred_fallthru
      _
    // Predicated region
    $region18: #{tpu_custom_call.1} parent=1 // pred_check
      _
    $region19: #{tpu_custom_call.1} parent=1 // pred_check_branch
      %57 = sbr.rel (0) target = $region21
    $region20: #{tpu_custom_call.1} parent=1 // pred_region
      %58 = dma.done [#allocation4], 64
    $region21: #{tpu_custom_call.1} parent=1 // pred_fallthru
      _
    %59 = vsyncpa [#allocation3], 1
    %60 = vsyncpa [#allocation4], 1

</llo_original>
